<compile_context>
chip_gen: v6e
topology: v6e:2x2x1
jax: 0.10.0
libtpu: 0.0.40
codegen_flags: <defaults>
</compile_context>

<pallas_src>
import functools

import jax
import jax.numpy as jnp
from jax.experimental import pallas as pl
from jax.experimental.pallas import tpu as pltpu

# Packed weight-slab layout: (32, 16) float32, weights stored as (in, out).
#   rows  0:11, cols 0:6   -> W1  (11, 6)
#   row     11, cols 0:6   -> b1
#   rows 12:18, cols 0:4   -> [W21 | W22] fused (6, 4)
#   row     18, cols 0:4   -> [b21 | b22]
#   rows 19:21, cols 0:6   -> W3  (2, 6)
#   row     21, cols 0:6   -> b3
#   rows 22:28, cols 0:11  -> W4  (6, 11)
#   row     28, cols 0:11  -> b4
_SLAB_SHAPE = (32, 16)


def _vae_kernel(w_ref, x_ref, eps_ref, out_ref):
    W = w_ref[...]                                 # (32, 16) resident slab
    w1 = W[0:11, 0:6]
    b1 = W[11:12, 0:6]
    w2c = W[12:18, 0:4]                            # fused [fc21 | fc22]
    b2c = W[18:19, 0:4]
    w3 = W[19:21, 0:6]
    b3 = W[21:22, 0:6]
    w4 = W[22:28, 0:11]
    b4 = W[28:29, 0:11]

    x = x_ref[...]                                 # (TB, 11)
    eps = eps_ref[...]                             # (TB, 2)

    # ---- encoder ----
    h = jnp.maximum(
        jnp.dot(x, w1, preferred_element_type=jnp.float32) + b1, 0.0)      # relu(fc1)
    mv = jnp.maximum(
        jnp.dot(h, w2c, preferred_element_type=jnp.float32) + b2c, 0.0)    # relu(fc21|fc22)
    mu = mv[:, 0:2]
    var = mv[:, 2:4]                               # (ReLU'd) log-variance

    # ---- reparameterize ----
    z = mu + eps * jnp.exp(0.5 * var)

    # ---- decoder ----
    h2 = jnp.maximum(
        jnp.dot(z, w3, preferred_element_type=jnp.float32) + b3, 0.0)      # relu(fc3)
    recon = jax.nn.sigmoid(
        jnp.dot(h2, w4, preferred_element_type=jnp.float32) + b4)          # sigmoid(fc4)

    # Single lane-packed store: [recon(11) | mu(2) | var(2) | pad(1)] -> (TB, 16)
    pad = jnp.zeros((x.shape[0], 1), jnp.float32)
    out_ref[...] = jnp.concatenate([recon, mu, var, pad], axis=1)


def _round_up(n, m):
    return ((n + m - 1) // m) * m


def init_params(key):
    """Deterministic synthetic parameters matching PyTorch nn.Linear shapes."""
    dims = [("fc1", 11, 6), ("fc21", 6, 2), ("fc22", 6, 2), ("fc3", 2, 6), ("fc4", 6, 11)]
    params = {}
    for name, fan_in, fan_out in dims:
        key, kw, kb = jax.random.split(key, 3)
        bound = 1.0 / jnp.sqrt(fan_in)
        # PyTorch stores weight as (out, in); we keep that convention here.
        w = jax.random.uniform(kw, (fan_out, fan_in), jnp.float32, -bound, bound)
        b = jax.random.uniform(kb, (fan_out,), jnp.float32, -bound, bound)
        params[name] = (w, b)
    return params


def pack_params(params):
    """Pack all weights/biases (transposed to (in, out)) into one (32, 16) f32 slab.

    Call once per parameter set; hoisted out of the per-forward path.
    """
    w1, b1 = params["fc1"]     # (6, 11), (6,)
    w21, b21 = params["fc21"]  # (2, 6),  (2,)
    w22, b22 = params["fc22"]  # (2, 6),  (2,)
    w3, b3 = params["fc3"]     # (6, 2),  (6,)
    w4, b4 = params["fc4"]     # (11, 6), (11,)

    w2c = jnp.concatenate([w21.T, w22.T], axis=1).astype(jnp.float32)   # (6, 4)
    b2c = jnp.concatenate([b21, b22]).astype(jnp.float32)               # (4,)

    slab = jnp.zeros(_SLAB_SHAPE, jnp.float32)
    slab = slab.at[0:11, 0:6].set(w1.T.astype(jnp.float32))
    slab = slab.at[11, 0:6].set(b1.astype(jnp.float32))
    slab = slab.at[12:18, 0:4].set(w2c)
    slab = slab.at[18, 0:4].set(b2c)
    slab = slab.at[19:21, 0:6].set(w3.T.astype(jnp.float32))
    slab = slab.at[21, 0:6].set(b3.astype(jnp.float32))
    slab = slab.at[22:28, 0:11].set(w4.T.astype(jnp.float32))
    slab = slab.at[28, 0:11].set(b4.astype(jnp.float32))
    return slab


@functools.partial(jax.jit, static_argnames=("block_rows",))
def encoder_decoder_forward(x, eps, w_packed, *, block_rows=1024):
    """x: anything reshaping to (B, 11); eps: (B, 2) (the randn_like draw).

    Returns (recon (B,11), mu (B,2), var (B,2)) — `var` is the ReLU'd log-variance,
    exactly like the PyTorch module.
    """
    x = x.reshape(-1, 11).astype(jnp.float32)      # mirrors x.view(-1, 11)
    eps = eps.astype(jnp.float32)
    B = x.shape[0]

    # Row block: multiple of 8 sublanes; pad B up so the block divides evenly.
    tb = block_rows if B >= block_rows else _round_up(max(B, 1), 8)
    b_pad = _round_up(B, tb)
    if b_pad != B:
        x = jnp.pad(x, ((0, b_pad - B), (0, 0)))
        eps = jnp.pad(eps, ((0, b_pad - B), (0, 0)))

    out = pl.pallas_call(
        _vae_kernel,
        out_shape=jax.ShapeDtypeStruct((b_pad, 16), jnp.float32),
        grid=(b_pad // tb,),
        in_specs=[
            pl.BlockSpec(_SLAB_SHAPE, lambda i: (0, 0)),   # weights resident
            pl.BlockSpec((tb, 11), lambda i: (i, 0)),      # x rows
            pl.BlockSpec((tb, 2), lambda i: (i, 0)),       # eps rows
        ],
        out_specs=pl.BlockSpec((tb, 16), lambda i: (i, 0)),
        compiler_params=pltpu.CompilerParams(
            dimension_semantics=("parallel",)),            # megacore / v7x 2-TC split
    )(w_packed, x, eps)

    recon = out[:B, 0:11]
    mu = out[:B, 11:13]
    var = out[:B, 13:15]
    return recon, mu, var


def reference_forward(x, eps, params):
    """Pure-JAX reference mirroring the PyTorch module."""
    def lin(name, v):
        w, b = params[name]
        return v @ w.T + b

    x = x.reshape(-1, 11)
    h = jax.nn.relu(lin("fc1", x))
    mu = jax.nn.relu(lin("fc21", h))
    var = jax.nn.relu(lin("fc22", h))
    z = mu + eps * jnp.exp(0.5 * var)
    h2 = jax.nn.relu(lin("fc3", z))
    recon = jax.nn.sigmoid(lin("fc4", h2))
    return recon, mu, var


if __name__ == "__main__":
    key = jax.random.PRNGKey(0)
    k_param, k_x, k_eps = jax.random.split(key, 3)

    params = init_params(k_param)
    w_packed = pack_params(params)        # packed once, outside the per-call path

    # --- small batch: single block, grid=(1,) ---
    B = 8
    x = jax.random.normal(k_x, (B, 11), jnp.float32)
    eps = jax.random.normal(k_eps, (B, 2), jnp.float32)   # torch.randn_like(std)

    recon, mu, var = encoder_decoder_forward(x, eps, w_packed)
    jax.block_until_ready((recon, mu, var))

    r_ref, m_ref, v_ref = reference_forward(x, eps, params)
    assert recon.shape == (B, 11) and mu.shape == (B, 2) and var.shape == (B, 2)
    assert jnp.allclose(recon, r_ref, atol=1e-4, rtol=1e-4)
    assert jnp.allclose(mu, m_ref, atol=1e-4, rtol=1e-4)
    assert jnp.allclose(var, v_ref, atol=1e-4, rtol=1e-4)

    # --- exercise multi-block grid + batch padding (B not a multiple of the block) ---
    B2 = 37
    x2 = jax.random.normal(k_x, (B2, 11), jnp.float32)
    eps2 = jax.random.normal(k_eps, (B2, 2), jnp.float32)
    r2, m2, v2 = encoder_decoder_forward(x2, eps2, w_packed, block_rows=16)
    jax.block_until_ready((r2, m2, v2))
    r2r, m2r, v2r = reference_forward(x2, eps2, params)
    assert r2.shape == (B2, 11) and m2.shape == (B2, 2) and v2.shape == (B2, 2)
    assert jnp.allclose(r2, r2r, atol=1e-4, rtol=1e-4)
    assert jnp.allclose(m2, m2r, atol=1e-4, rtol=1e-4)
    assert jnp.allclose(v2, v2r, atol=1e-4, rtol=1e-4)

    print("KERNEL_OK")
</pallas_src>

<mosaic_0001>
module attributes {stable_mosaic.version = 11 : i64} {
  func.func @_vae_kernel(%arg0: i32, %arg1: memref<32x16xf32, #tpu.memory_space<vmem>>, %arg2: memref<8x11xf32, #tpu.memory_space<vmem>>, %arg3: memref<8x2xf32, #tpu.memory_space<vmem>>, %arg4: memref<8x16xf32, #tpu.memory_space<vmem>>) attributes {dimension_semantics = [#tpu.dimension_semantics<parallel>], iteration_bounds = array<i64: 1>, scalar_prefetch = 0 : i64, scratch_operands = 0 : i64, tpu.core_type = #tpu.core_type<tc>, window_params = [{pipeline_mode = #tpu.pipeline_mode<synchronous>, transform_indices = @transform_0, window_bounds = array<i64: 32, 16>}, {transform_indices = @transform_1, window_bounds = array<i64: 8, 11>}, {transform_indices = @transform_2, window_bounds = array<i64: 8, 2>}, {transform_indices = @transform_3, window_bounds = array<i64: 8, 16>}]} {
    %c0 = arith.constant 0 : index
    %c0_0 = arith.constant 0 : index
    %0 = vector.load %arg1[%c0, %c0_0] : memref<32x16xf32, #tpu.memory_space<vmem>>, vector<32x16xf32>
    %1 = vector.extract_strided_slice %0 {offsets = [0, 0], sizes = [11, 6], strides = [1, 1]} : vector<32x16xf32> to vector<11x6xf32>
    %2 = vector.extract_strided_slice %0 {offsets = [11, 0], sizes = [1, 6], strides = [1, 1]} : vector<32x16xf32> to vector<1x6xf32>
    %3 = vector.extract_strided_slice %0 {offsets = [12, 0], sizes = [6, 4], strides = [1, 1]} : vector<32x16xf32> to vector<6x4xf32>
    %4 = vector.extract_strided_slice %0 {offsets = [18, 0], sizes = [1, 4], strides = [1, 1]} : vector<32x16xf32> to vector<1x4xf32>
    %5 = vector.extract_strided_slice %0 {offsets = [19, 0], sizes = [2, 6], strides = [1, 1]} : vector<32x16xf32> to vector<2x6xf32>
    %6 = vector.extract_strided_slice %0 {offsets = [21, 0], sizes = [1, 6], strides = [1, 1]} : vector<32x16xf32> to vector<1x6xf32>
    %7 = vector.extract_strided_slice %0 {offsets = [22, 0], sizes = [6, 11], strides = [1, 1]} : vector<32x16xf32> to vector<6x11xf32>
    %8 = vector.extract_strided_slice %0 {offsets = [28, 0], sizes = [1, 11], strides = [1, 1]} : vector<32x16xf32> to vector<1x11xf32>
    %c0_1 = arith.constant 0 : index
    %c0_2 = arith.constant 0 : index
    %9 = vector.load %arg2[%c0_1, %c0_2] : memref<8x11xf32, #tpu.memory_space<vmem>>, vector<8x11xf32>
    %c0_3 = arith.constant 0 : index
    %c0_4 = arith.constant 0 : index
    %10 = vector.load %arg3[%c0_3, %c0_4] : memref<8x2xf32, #tpu.memory_space<vmem>>, vector<8x2xf32>
    %cst = arith.constant dense<0.000000e+00> : vector<8x6xf32>
    %11 = tpu.matmul %9, %1, %cst {dimension_numbers = #tpu.dot_dimension_numbers<[1], [0], [0], [1], [0, 0, 1, 1], [], []>} : vector<8x11xf32>, vector<11x6xf32>, vector<8x6xf32> -> vector<8x6xf32>
    %12 = vector.broadcast %2 : vector<1x6xf32> to vector<8x6xf32>
    %13 = arith.addf %11, %12 : vector<8x6xf32>
    %cst_5 = arith.constant 0.000000e+00 : f32
    %14 = vector.broadcast %cst_5 : f32 to vector<8x6xf32>
    %15 = arith.maximumf %13, %14 : vector<8x6xf32>
    %cst_6 = arith.constant dense<0.000000e+00> : vector<8x4xf32>
    %16 = tpu.matmul %15, %3, %cst_6 {dimension_numbers = #tpu.dot_dimension_numbers<[1], [0], [0], [1], [0, 0, 1, 1], [], []>} : vector<8x6xf32>, vector<6x4xf32>, vector<8x4xf32> -> vector<8x4xf32>
    %17 = vector.broadcast %4 : vector<1x4xf32> to vector<8x4xf32>
    %18 = arith.addf %16, %17 : vector<8x4xf32>
    %cst_7 = arith.constant 0.000000e+00 : f32
    %19 = vector.broadcast %cst_7 : f32 to vector<8x4xf32>
    %20 = arith.maximumf %18, %19 : vector<8x4xf32>
    %21 = vector.extract_strided_slice %20 {offsets = [0, 0], sizes = [8, 2], strides = [1, 1]} : vector<8x4xf32> to vector<8x2xf32>
    %22 = vector.extract_strided_slice %20 {offsets = [0, 2], sizes = [8, 2], strides = [1, 1]} : vector<8x4xf32> to vector<8x2xf32>
    %cst_8 = arith.constant 5.000000e-01 : f32
    %23 = vector.broadcast %cst_8 : f32 to vector<8x2xf32>
    %24 = arith.mulf %23, %22 : vector<8x2xf32>
    %25 = math.exp %24 : vector<8x2xf32>
    %26 = arith.mulf %10, %25 : vector<8x2xf32>
    %27 = arith.addf %21, %26 : vector<8x2xf32>
    %cst_9 = arith.constant dense<0.000000e+00> : vector<8x6xf32>
    %28 = tpu.matmul %27, %5, %cst_9 {dimension_numbers = #tpu.dot_dimension_numbers<[1], [0], [0], [1], [0, 0, 1, 1], [], []>} : vector<8x2xf32>, vector<2x6xf32>, vector<8x6xf32> -> vector<8x6xf32>
    %29 = vector.broadcast %6 : vector<1x6xf32> to vector<8x6xf32>
    %30 = arith.addf %28, %29 : vector<8x6xf32>
    %cst_10 = arith.constant 0.000000e+00 : f32
    %31 = vector.broadcast %cst_10 : f32 to vector<8x6xf32>
    %32 = arith.maximumf %30, %31 : vector<8x6xf32>
    %cst_11 = arith.constant dense<0.000000e+00> : vector<8x11xf32>
    %33 = tpu.matmul %32, %7, %cst_11 {dimension_numbers = #tpu.dot_dimension_numbers<[1], [0], [0], [1], [0, 0, 1, 1], [], []>} : vector<8x6xf32>, vector<6x11xf32>, vector<8x11xf32> -> vector<8x11xf32>
    %34 = vector.broadcast %8 : vector<1x11xf32> to vector<8x11xf32>
    %35 = arith.addf %33, %34 : vector<8x11xf32>
    %36 = arith.negf %35 : vector<8x11xf32>
    %37 = math.exp %36 : vector<8x11xf32>
    %cst_12 = arith.constant 1.000000e+00 : f32
    %38 = vector.broadcast %cst_12 : f32 to vector<8x11xf32>
    %39 = arith.addf %38, %37 : vector<8x11xf32>
    %40 = arith.divf %38, %39 : vector<8x11xf32>
    %cst_13 = arith.constant 0.000000e+00 : f32
    %41 = vector.broadcast %cst_13 : f32 to vector<8x1xf32>
    %42 = tpu.concatenate %40, %21, %22, %41 in 1 : vector<8x11xf32>, vector<8x2xf32>, vector<8x2xf32>, vector<8x1xf32> -> vector<8x16xf32>
    %c0_14 = arith.constant 0 : index
    %c0_15 = arith.constant 0 : index
    %43 = vector.load %arg4[%c0_14, %c0_15] : memref<8x16xf32, #tpu.memory_space<vmem>>, vector<8x16xf32>
    tpu.vector_store %arg4[%c0_14, %c0_15], %42 {strides = array<i32>} : memref<8x16xf32, #tpu.memory_space<vmem>>, vector<8x16xf32>,
    return
  }
  func.func @transform_0(%arg0: i32) -> (i32, i32) {
    %c0_i32 = arith.constant 0 : i32
    %c0_i32_0 = arith.constant 0 : i32
    %c0_i32_1 = arith.constant 0 : i32
    return %c0_i32, %c0_i32_0 : i32, i32
  }
  func.func @transform_1(%arg0: i32) -> (i32, i32) {
    %c0_i32 = arith.constant 0 : i32
    %c0_i32_0 = arith.constant 0 : i32
    return %arg0, %c0_i32 : i32, i32
  }
  func.func @transform_2(%arg0: i32) -> (i32, i32) {
    %c0_i32 = arith.constant 0 : i32
    %c0_i32_0 = arith.constant 0 : i32
    return %arg0, %c0_i32 : i32, i32
  }
  func.func @transform_3(%arg0: i32) -> (i32, i32) {
    %c0_i32 = arith.constant 0 : i32
    %c0_i32_0 = arith.constant 0 : i32
    return %arg0, %c0_i32 : i32, i32
  }
}

</mosaic_0001>

<llo_original>
// kernel: encoder_decoder_forward.1
$region0: #{encoder_decoder_forward.1}
  #allocation0 [shape = 'u32[]', space=smem, size = 0x4, offset = 0x4, fixed_abs, tag = 'smem constant byte address 0x4 - core index']
  #allocation1 [shape = 'u32[144,128]{1,0:T(1,128)}', space=vmem, size = 0x12000, scoped, tag = 'internal scratch']
  %s0 = inlined_call_operand.vmem [shape: f32[32,16], index: 0, kind: input, shape index: {}]
  %s1 = inlined_call_operand.vmem [shape: f32[8,11], index: 1, kind: input, shape index: {}]
  %s2 = inlined_call_operand.vmem [shape: f32[8,2], index: 2, kind: input, shape index: {}]
  %s3 = inlined_call_operand.vmem [shape: f32[8,16], index: 3, kind: output, shape index: {}]
  %s4 = sld [smem:[#allocation0]]
  $region22: #{encoder_decoder_forward.1} parent=0
    _
  %s6 = ssub.s32 1, %s4
  %s7 = scalar_select 0, %s6, %s4
  // Predicated region
  $region2: #{encoder_decoder_forward.1} parent=0 // pred_check
    _
  $region3: #{encoder_decoder_forward.1} parent=0 // pred_check_branch
    %9 = sbr.rel (0) target = $region5
  $region4: #{encoder_decoder_forward.1} parent=0 // pred_region
    _
  $region5: #{encoder_decoder_forward.1} parent=0 // pred_fallthru
    _
  // Predicated region
  $region6: #{encoder_decoder_forward.1} parent=0 // pred_check
    _
  $region7: #{encoder_decoder_forward.1} parent=0 // pred_check_branch
    %11 = sbr.rel (0) target = $region9
  $region8: #{encoder_decoder_forward.1} parent=0 // pred_region
    _
  $region9: #{encoder_decoder_forward.1} parent=0 // pred_fallthru
    _
  // Predicated region
  $region10: #{encoder_decoder_forward.1} parent=0 // pred_check
    _
  $region11: #{encoder_decoder_forward.1} parent=0 // pred_check_branch
    %13 = sbr.rel (0) target = $region13
  $region12: #{encoder_decoder_forward.1} parent=0 // pred_region
    _
  $region13: #{encoder_decoder_forward.1} parent=0 // pred_fallthru
    _
  %v14 = vld [vmem:[%s0] sm:$0xff]
  %v15 = vld [vmem:[%s0 + $0x8] sm:$0xff]
  %v16 = vld [vmem:[%s0 + $0x10] sm:$0xff]
  %v17 = vld [vmem:[%s0 + $0x18] sm:$0xff]
  %v18 = vld [vmem:[%s1] sm:$0xff]
  %v19 = vld [vmem:[%s2] sm:$0xff]
  %v20 = vlaneseq
  %v21 = vshrl.u32 %v20, 7
  %v22 = vsub.s32 3, %v21
  %v23 = vrot.slane %v15, %v22
  %vm24 = vcmask 89088
  %v26 = vsel %vm24, %v18, 0
  %vm28 = vcmask 1042432
  %v30 = vsel %vm28, %v15, 0
  %32 = vmatprep.subr.mxu0 0.0
  %33 = vmatpush1.msra.mxu0 0.0
  %34 = vmatprep.subr.mxu0 0.0
  %35 = vmatpush1.msra.mxu0 0.0
  %36 = vmatprep.subr.mxu0 0.0
  %37 = vmatpush1.msra.mxu0 0.0
  %38 = vmatprep.subr.mxu0 0.0
  %39 = vmatpush1.msra.mxu0 0.0
  %40 = vmatprep.subr.mxu0 0.0
  %41 = vmatpush1.msra.mxu0 0.0
  %42 = vmatprep.subr.mxu0 0.0
  %43 = vmatpush1.msra.mxu0 0.0
  %44 = vmatprep.subr.mxu0 0.0
  %45 = vmatpush1.msra.mxu0 0.0
  %46 = vmatprep.subr.mxu0 0.0
  %47 = vmatpush1.msra.mxu0 0.0
  %48 = vmatprep.subr.mxu0 0.0
  %49 = vmatpush1.msra.mxu0 0.0
  %50 = vmatprep.subr.mxu0 0.0
  %51 = vmatpush1.msra.mxu0 0.0
  %52 = vmatprep.subr.mxu0 0.0
  %53 = vmatpush1.msra.mxu0 0.0
  %54 = vmatprep.subr.mxu0 0.0
  %55 = vmatpush1.msra.mxu0 0.0
  %56 = vmatprep.subr.mxu0 0.0
  %57 = vmatpush1.msra.mxu0 0.0
  %58 = vmatprep.subr.mxu0 0.0
  %59 = vmatpush1.msra.mxu0 0.0
  %60 = vmatprep.subr.mxu0 0.0
  %61 = vmatpush1.msra.mxu0 %v30
  %62 = vmatprep.subr.mxu0 0.0
  %63 = vmatpush1.msra.mxu0 %v14
  %64 = vmatprep.subr.mxu0 0.0
  %65 = vmatpush2.msra.mxu0 0.0
  %66 = vmatprep.subr.mxu0 0.0
  %67 = vmatpush2.msra.mxu0 0.0
  %68 = vmatprep.subr.mxu0 0.0
  %69 = vmatpush2.msra.mxu0 0.0
  %70 = vmatprep.subr.mxu0 0.0
  %71 = vmatpush2.msra.mxu0 0.0
  %72 = vmatprep.subr.mxu0 0.0
  %73 = vmatpush2.msra.mxu0 0.0
  %74 = vmatprep.subr.mxu0 0.0
  %75 = vmatpush2.msra.mxu0 0.0
  %76 = vmatprep.subr.mxu0 0.0
  %77 = vmatpush2.msra.mxu0 0.0
  %78 = vmatprep.subr.mxu0 0.0
  %79 = vmatpush2.msra.mxu0 0.0
  %80 = vmatprep.subr.mxu0 0.0
  %81 = vmatpush2.msra.mxu0 0.0
  %82 = vmatprep.subr.mxu0 0.0
  %83 = vmatpush2.msra.mxu0 0.0
  %84 = vmatprep.subr.mxu0 0.0
  %85 = vmatpush2.msra.mxu0 0.0
  %86 = vmatprep.subr.mxu0 0.0
  %87 = vmatpush2.msra.mxu0 0.0
  %88 = vmatprep.subr.mxu0 0.0
  %89 = vmatpush2.msra.mxu0 0.0
  %90 = vmatprep.subr.mxu0 0.0
  %91 = vmatpush2.msra.mxu0 0.0
  %92 = vmatprep.subr.mxu0 0.0
  %93 = vmatpush2.msra.mxu0 0.0
  %94 = vmatprep.subr.mxu0 0.0
  %95 = vmatpush2.msra.mxu0 0.0
  %96 = vmatprep.mubr.f32.mxu0 0.0
  %97 = vmatmul.mubr.f32.gmra.mxu0 %v26
  %v98 = vpop.f32.mrf.mxu0
  %v99 = vadd.f32 %v23, %v98
  %v100 = vpop.f32.mrf.mxu0
  %101 = vdwg.mxu0
  %v102 = vmax.f32 %v99, 0.0
  %v103 = vlaneseq
  %v104 = vshrl.u32 %v103, 7
  %v105 = vsub.s32 2, %v104
  %v106 = vrot.slane %v16, %v105
  %vm108 = vcmask 1043456
  %v109 = vrot.slane %v15, 4
  %v110 = vrot.slane %v16, 4
  %v111 = vsel %vm108, %v109, %v110
  %vm112 = vcmask 48128
  %v114 = vsel %vm112, %v102, 0
  %vm116 = vcmask 1045504
  %v117 = vsel %vm116, %v111, 0
  %119 = vmatprep.subr.mxu0 0.0
  %120 = vmatpush1.msra.mxu0 0.0
  %121 = vmatprep.subr.mxu0 0.0
  %122 = vmatpush1.msra.mxu0 0.0
  %123 = vmatprep.subr.mxu0 0.0
  %124 = vmatpush1.msra.mxu0 0.0
  %125 = vmatprep.subr.mxu0 0.0
  %126 = vmatpush1.msra.mxu0 0.0
  %127 = vmatprep.subr.mxu0 0.0
  %128 = vmatpush1.msra.mxu0 0.0
  %129 = vmatprep.subr.mxu0 0.0
  %130 = vmatpush1.msra.mxu0 0.0
  %131 = vmatprep.subr.mxu0 0.0
  %132 = vmatpush1.msra.mxu0 0.0
  %133 = vmatprep.subr.mxu0 0.0
  %134 = vmatpush1.msra.mxu0 0.0
  %135 = vmatprep.subr.mxu0 0.0
  %136 = vmatpush1.msra.mxu0 0.0
  %137 = vmatprep.subr.mxu0 0.0
  %138 = vmatpush1.msra.mxu0 0.0
  %139 = vmatprep.subr.mxu0 0.0
  %140 = vmatpush1.msra.mxu0 0.0
  %141 = vmatprep.subr.mxu0 0.0
  %142 = vmatpush1.msra.mxu0 0.0
  %143 = vmatprep.subr.mxu0 0.0
  %144 = vmatpush1.msra.mxu0 0.0
  %145 = vmatprep.subr.mxu0 0.0
  %146 = vmatpush1.msra.mxu0 0.0
  %147 = vmatprep.subr.mxu0 0.0
  %148 = vmatpush1.msra.mxu0 0.0
  %149 = vmatprep.subr.mxu0 0.0
  %150 = vmatpush1.msra.mxu0 %v117
  %151 = vmatprep.subr.mxu0 0.0
  %152 = vmatpush2.msra.mxu0 0.0
  %153 = vmatprep.subr.mxu0 0.0
  %154 = vmatpush2.msra.mxu0 0.0
  %155 = vmatprep.subr.mxu0 0.0
  %156 = vmatpush2.msra.mxu0 0.0
  %157 = vmatprep.subr.mxu0 0.0
  %158 = vmatpush2.msra.mxu0 0.0
  %159 = vmatprep.subr.mxu0 0.0
  %160 = vmatpush2.msra.mxu0 0.0
  %161 = vmatprep.subr.mxu0 0.0
  %162 = vmatpush2.msra.mxu0 0.0
  %163 = vmatprep.subr.mxu0 0.0
  %164 = vmatpush2.msra.mxu0 0.0
  %165 = vmatprep.subr.mxu0 0.0
  %166 = vmatpush2.msra.mxu0 0.0
  %167 = vmatprep.subr.mxu0 0.0
  %168 = vmatpush2.msra.mxu0 0.0
  %169 = vmatprep.subr.mxu0 0.0
  %170 = vmatpush2.msra.mxu0 0.0
  %171 = vmatprep.subr.mxu0 0.0
  %172 = vmatpush2.msra.mxu0 0.0
  %173 = vmatprep.subr.mxu0 0.0
  %174 = vmatpush2.msra.mxu0 0.0
  %175 = vmatprep.subr.mxu0 0.0
  %176 = vmatpush2.msra.mxu0 0.0
  %177 = vmatprep.subr.mxu0 0.0
  %178 = vmatpush2.msra.mxu0 0.0
  %179 = vmatprep.subr.mxu0 0.0
  %180 = vmatpush2.msra.mxu0 0.0
  %181 = vmatprep.subr.mxu0 0.0
  %182 = vmatpush2.msra.mxu0 0.0
  %183 = vmatprep.mubr.f32.mxu0 0.0
  %184 = vmatmul.mubr.f32.gmra.mxu0 %v114
  %v185 = vpop.f32.mrf.mxu0
  %v186 = vadd.f32 %v106, %v185
  %v187 = vpop.f32.mrf.mxu0
  %188 = vdwg.mxu0
  %v189 = vmax.f32 %v186, 0.0
  %v190 = vmul.f32 %v189, 0.5
  %v191 = vmul.f32 %v190, 1.442695
  %v192 = vpow.pop %v191
  %194 = vrot.lane.b32.xlu0 %v192, 126
  %v195 = vpop.permute.xlu0 %194
  %v197 = vmul.f32 %v19, %v195
  %v198 = vadd.f32 %v189, %v197
  %v199 = vlaneseq
  %v200 = vshrl.u32 %v199, 7
  %v201 = vsub.s32 5, %v200
  %v202 = vrot.slane %v16, %v201
  %v203 = vrot.slane %v16, 3
  %vm204 = vcmask 15360
  %v206 = vsel %vm204, %v198, 0
  %vm208 = vcmask 1041408
  %v209 = vsel %vm208, %v203, 0
  %211 = vmatprep.subr.mxu0 0.0
  %212 = vmatpush1.msra.mxu0 0.0
  %213 = vmatprep.subr.mxu0 0.0
  %214 = vmatpush1.msra.mxu0 0.0
  %215 = vmatprep.subr.mxu0 0.0
  %216 = vmatpush1.msra.mxu0 0.0
  %217 = vmatprep.subr.mxu0 0.0
  %218 = vmatpush1.msra.mxu0 0.0
  %219 = vmatprep.subr.mxu0 0.0
  %220 = vmatpush1.msra.mxu0 0.0
  %221 = vmatprep.subr.mxu0 0.0
  %222 = vmatpush1.msra.mxu0 0.0
  %223 = vmatprep.subr.mxu0 0.0
  %224 = vmatpush1.msra.mxu0 0.0
  %225 = vmatprep.subr.mxu0 0.0
  %226 = vmatpush1.msra.mxu0 0.0
  %227 = vmatprep.subr.mxu0 0.0
  %228 = vmatpush1.msra.mxu0 0.0
  %229 = vmatprep.subr.mxu0 0.0
  %230 = vmatpush1.msra.mxu0 0.0
  %231 = vmatprep.subr.mxu0 0.0
  %232 = vmatpush1.msra.mxu0 0.0
  %233 = vmatprep.subr.mxu0 0.0
  %234 = vmatpush1.msra.mxu0 0.0
  %235 = vmatprep.subr.mxu0 0.0
  %236 = vmatpush1.msra.mxu0 0.0
  %237 = vmatprep.subr.mxu0 0.0
  %238 = vmatpush1.msra.mxu0 0.0
  %239 = vmatprep.subr.mxu0 0.0
  %240 = vmatpush1.msra.mxu0 0.0
  %241 = vmatprep.subr.mxu0 0.0
  %242 = vmatpush1.msra.mxu0 %v209
  %243 = vmatprep.subr.mxu0 0.0
  %244 = vmatpush2.msra.mxu0 0.0
  %245 = vmatprep.subr.mxu0 0.0
  %246 = vmatpush2.msra.mxu0 0.0
  %247 = vmatprep.subr.mxu0 0.0
  %248 = vmatpush2.msra.mxu0 0.0
  %249 = vmatprep.subr.mxu0 0.0
  %250 = vmatpush2.msra.mxu0 0.0
  %251 = vmatprep.subr.mxu0 0.0
  %252 = vmatpush2.msra.mxu0 0.0
  %253 = vmatprep.subr.mxu0 0.0
  %254 = vmatpush2.msra.mxu0 0.0
  %255 = vmatprep.subr.mxu0 0.0
  %256 = vmatpush2.msra.mxu0 0.0
  %257 = vmatprep.subr.mxu0 0.0
  %258 = vmatpush2.msra.mxu0 0.0
  %259 = vmatprep.subr.mxu0 0.0
  %260 = vmatpush2.msra.mxu0 0.0
  %261 = vmatprep.subr.mxu0 0.0
  %262 = vmatpush2.msra.mxu0 0.0
  %263 = vmatprep.subr.mxu0 0.0
  %264 = vmatpush2.msra.mxu0 0.0
  %265 = vmatprep.subr.mxu0 0.0
  %266 = vmatpush2.msra.mxu0 0.0
  %267 = vmatprep.subr.mxu0 0.0
  %268 = vmatpush2.msra.mxu0 0.0
  %269 = vmatprep.subr.mxu0 0.0
  %270 = vmatpush2.msra.mxu0 0.0
  %271 = vmatprep.subr.mxu0 0.0
  %272 = vmatpush2.msra.mxu0 0.0
  %273 = vmatprep.subr.mxu0 0.0
  %274 = vmatpush2.msra.mxu0 0.0
  %275 = vmatprep.mubr.f32.mxu0 0.0
  %276 = vmatmul.mubr.f32.gmra.mxu0 %v206
  %v277 = vpop.f32.mrf.mxu0
  %v278 = vadd.f32 %v202, %v277
  %v279 = vpop.f32.mrf.mxu0
  %280 = vdwg.mxu0
  %v281 = vmax.f32 %v278, 0.0
  %v282 = vlaneseq
  %v283 = vshrl.u32 %v282, 7
  %v284 = vsub.s32 4, %v283
  %v285 = vrot.slane %v17, %v284
  %v287 = vrot.slane %v16, 6
  %v288 = vrot.slane %v17, 6
  %v289 = vsel %vm208, %v287, %v288
  %v291 = vsel %vm112, %v281, 0
  %v293 = vsel %vm116, %v289, 0
  %295 = vmatprep.subr.mxu0 0.0
  %296 = vmatpush1.msra.mxu0 0.0
  %297 = vmatprep.subr.mxu0 0.0
  %298 = vmatpush1.msra.mxu0 0.0
  %299 = vmatprep.subr.mxu0 0.0
  %300 = vmatpush1.msra.mxu0 0.0
  %301 = vmatprep.subr.mxu0 0.0
  %302 = vmatpush1.msra.mxu0 0.0
  %303 = vmatprep.subr.mxu0 0.0
  %304 = vmatpush1.msra.mxu0 0.0
  %305 = vmatprep.subr.mxu0 0.0
  %306 = vmatpush1.msra.mxu0 0.0
  %307 = vmatprep.subr.mxu0 0.0
  %308 = vmatpush1.msra.mxu0 0.0
  %309 = vmatprep.subr.mxu0 0.0
  %310 = vmatpush1.msra.mxu0 0.0
  %311 = vmatprep.subr.mxu0 0.0
  %312 = vmatpush1.msra.mxu0 0.0
  %313 = vmatprep.subr.mxu0 0.0
  %314 = vmatpush1.msra.mxu0 0.0
  %315 = vmatprep.subr.mxu0 0.0
  %316 = vmatpush1.msra.mxu0 0.0
  %317 = vmatprep.subr.mxu0 0.0
  %318 = vmatpush1.msra.mxu0 0.0
  %319 = vmatprep.subr.mxu0 0.0
  %320 = vmatpush1.msra.mxu0 0.0
  %321 = vmatprep.subr.mxu0 0.0
  %322 = vmatpush1.msra.mxu0 0.0
  %323 = vmatprep.subr.mxu0 0.0
  %324 = vmatpush1.msra.mxu0 0.0
  %325 = vmatprep.subr.mxu0 0.0
  %326 = vmatpush1.msra.mxu0 %v293
  %327 = vmatprep.subr.mxu0 0.0
  %328 = vmatpush2.msra.mxu0 0.0
  %329 = vmatprep.subr.mxu0 0.0
  %330 = vmatpush2.msra.mxu0 0.0
  %331 = vmatprep.subr.mxu0 0.0
  %332 = vmatpush2.msra.mxu0 0.0
  %333 = vmatprep.subr.mxu0 0.0
  %334 = vmatpush2.msra.mxu0 0.0
  %335 = vmatprep.subr.mxu0 0.0
  %336 = vmatpush2.msra.mxu0 0.0
  %337 = vmatprep.subr.mxu0 0.0
  %338 = vmatpush2.msra.mxu0 0.0
  %339 = vmatprep.subr.mxu0 0.0
  %340 = vmatpush2.msra.mxu0 0.0
  %341 = vmatprep.subr.mxu0 0.0
  %342 = vmatpush2.msra.mxu0 0.0
  %343 = vmatprep.subr.mxu0 0.0
  %344 = vmatpush2.msra.mxu0 0.0
  %345 = vmatprep.subr.mxu0 0.0
  %346 = vmatpush2.msra.mxu0 0.0
  %347 = vmatprep.subr.mxu0 0.0
  %348 = vmatpush2.msra.mxu0 0.0
  %349 = vmatprep.subr.mxu0 0.0
  %350 = vmatpush2.msra.mxu0 0.0
  %351 = vmatprep.subr.mxu0 0.0
  %352 = vmatpush2.msra.mxu0 0.0
  %353 = vmatprep.subr.mxu0 0.0
  %354 = vmatpush2.msra.mxu0 0.0
  %355 = vmatprep.subr.mxu0 0.0
  %356 = vmatpush2.msra.mxu0 0.0
  %357 = vmatprep.subr.mxu0 0.0
  %358 = vmatpush2.msra.mxu0 0.0
  %359 = vmatprep.mubr.f32.mxu0 0.0
  %360 = vmatmul.mubr.f32.gmra.mxu0 %v291
  %v361 = vpop.f32.mrf.mxu0
  %v362 = vadd.f32 %v285, %v361
  %v363 = vpop.f32.mrf.mxu0
  %364 = vdwg.mxu0
  %v365 = vxor.u32 %v362, 2147483648
  %v366 = vmul.f32 %v365, 1.442695
  %v367 = vpow.pop %v366
  %v368 = vadd.f32 %v367, 1.0
  %v369 = vrcp.pop %v368
  %v370 = vmul.f32 1.0, %v369
  %372 = vrot.lane.b32.xlu0 %v189, 11
  %v373 = vpop.permute.xlu0 %372
  %v375 = vsel %vm24, %v370, %v373
  %vm376 = vcmask 105472
  %v377 = vsel %vm376, %v375, %v373
  %vm378 = vcmask 121856
  %v379 = vsel %vm378, %v377, 0.0
  %vm380 = vcmask 130048
  %381 = vst.msk [vmem:[%s3] sm:$0xff] %vm380, %v379
  // Predicated region
  $region14: #{encoder_decoder_forward.1} parent=0 // pred_check
    _
  $region15: #{encoder_decoder_forward.1} parent=0 // pred_check_branch
    %383 = sbr.rel (0) target = $region17
  $region16: #{encoder_decoder_forward.1} parent=0 // pred_region
    _
  $region17: #{encoder_decoder_forward.1} parent=0 // pred_fallthru
    _
  // Predicated region
  $region18: #{encoder_decoder_forward.1} parent=0 // pred_check
    _
  $region19: #{encoder_decoder_forward.1} parent=0 // pred_check_branch
    %385 = sbr.rel (0) target = $region21
  $region20: #{encoder_decoder_forward.1} parent=0 // pred_region
    _
  $region21: #{encoder_decoder_forward.1} parent=0 // pred_fallthru
    _

</llo_original>
